<compile_context>
chip_gen: v7x
topology: tpu7x:2x2x1
jax: 0.10.0
libtpu: 0.0.40
codegen_flags: <defaults>
</compile_context>

<pallas_src>
import functools
import math

import numpy as np
import jax
import jax.numpy as jnp
from jax.experimental import pallas as pl
from jax.experimental.pallas import tpu as pltpu


# ----------------------------------------------------------------------------
# Pallas kernel: GNNCritic forward for one block of G graphs (node-minor layout)
# ----------------------------------------------------------------------------
def _gnn_critic_kernel(x_ref, coeff_ref, wg_ref, w1_ref, w2_ref, p_ref, out_ref,
                       *, C, A, G):
    """Shapes (per grid step, Nb = A*G lanes, local-node-major lane order):
       x_ref     (C+1, Nb)  rows 0..C-1 = state^T, row C = action row
       coeff_ref (A,   Nb)  coeff[d, a*G+g] = A_hat[g, a, (a-d) % A]
       wg_ref    (C, C)     Wg^T          w1_ref (H, C)  W1x^T     w2_ref (H, H)  W2^T
       p_ref     (H, 6)     columns [bg | w1a | b1 | b2 | w3 | b3]
       out_ref   (1, 1, G)  lane-dense Q row for the G graphs of this block."""
    H = w2_ref.shape[0]

    xa = x_ref[...]                          # (C+1, Nb)
    x = xa[0:C, :]                           # (C, Nb)  state^T
    act = xa[C:C + 1, :]                     # (1, Nb)  action row

    bg = p_ref[0:C, 0:1]                     # (C, 1)
    w1a = p_ref[0:H, 1:2]                    # (H, 1)
    b1 = p_ref[0:H, 2:3]
    b2 = p_ref[0:H, 3:4]
    w3 = p_ref[0:H, 4:5]
    b3 = p_ref[0:1, 5:6]                     # (1, 1)

    # --- GCNConv: out = A_hat @ (X @ Wg) + bg, transposed & block-diagonal ----
    xw = jnp.dot(wg_ref[...], x, preferred_element_type=jnp.float32)   # (C, Nb)
    # agg[:, a*G+g] = sum_b A_hat[g,a,b] * xw[:, b*G+g]; with local-node-major
    # lanes this is A lane-rotations by d*G plus VPU multiply-adds:
    #   roll(xw, d*G)[:, a*G+g] == xw[:, ((a-d)%A)*G + g]
    coeff = coeff_ref[...]                   # (A, Nb)
    agg = coeff[0:1, :] * xw                 # d = 0 (diagonal coefficients)
    for d in range(1, A):
        agg = agg + coeff[d:d + 1, :] * jnp.roll(xw, d * G, axis=1)
    res = jnp.maximum(agg + bg, 0.0) + x     # relu(conv1(state)) + state  (C, Nb)

    # --- lin1 on concat([x, action]):  W1x^T @ res + w1a (x) act + b1 ---------
    h1 = jnp.dot(w1_ref[...], res, preferred_element_type=jnp.float32)  # (H, Nb)
    h1 = jnp.maximum(h1 + w1a * act + b1, 0.0)

    # --- lin2 + relu -----------------------------------------------------------
    h2 = jnp.dot(w2_ref[...], h1, preferred_element_type=jnp.float32)   # (H, Nb)
    h2 = jnp.maximum(h2 + b2, 0.0)

    # --- per-graph sum over the A local nodes: lane-slab adds ------------------
    pooled = h2[:, 0:G]
    for a in range(1, A):
        pooled = pooled + h2[:, a * G:(a + 1) * G]                       # (H, G)

    # --- lin3 as multiply + sublane reduce (no single-row matmul) --------------
    q = jnp.sum(pooled * w3, axis=0, keepdims=True) + b3                 # (1, G)
    out_ref[...] = q.reshape(out_ref.shape)


# ----------------------------------------------------------------------------
# Blocking heuristics
# ----------------------------------------------------------------------------
def _round_up(x, m):
    return ((x + m - 1) // m) * m


def _g_align(act_dim):
    # graphs_per_block * act_dim (lane width per block) must be a multiple of 128
    return max(1, (128 * act_dim // math.gcd(128, act_dim)) // act_dim)


def _per_graph_vmem_bytes(C, A, H):
    r = lambda n: _round_up(max(n, 1), 8)
    # double-buffered inputs (state+action, coefficients) + live intermediates
    rows = 2 * (r(C + 1) + r(A)) + 3 * r(C) + 3 * r(H)
    return 4 * A * rows


def _choose_blocking(batch, act_dim, in_channels, hidden_size):
    """Pick (num_blocks, graphs_per_block), generation-aware."""
    ga = _g_align(act_dim)
    per_graph = _per_graph_vmem_bytes(in_channels, act_dim, hidden_size)
    try:
        info = pltpu.get_tpu_info()
        vmem_cap = int(getattr(info, "vmem_capacity_bytes", 0)) or 64 * 1024 * 1024
    except Exception:                      # no TPU visible at trace time: assume v7x
        vmem_cap = 64 * 1024 * 1024
    budget = vmem_cap // 4                 # leave room for compiler scratch etc.
    g_cap = max(ga, min(512, (budget // per_graph) // ga * ga))
    if batch > g_cap:
        g = g_cap
    elif batch >= 2 * ga:
        # keep >=2 grid steps so ("parallel",) lets v7x megacore split the batch
        g = _round_up((batch + 1) // 2, ga)
    else:
        g = _round_up(batch, ga)
    nblk = (batch + g - 1) // g
    return nblk, g


# ----------------------------------------------------------------------------
# Wrapper: layout plumbing + pallas_call
# ----------------------------------------------------------------------------
def gnn_critic_forward(state, ahat_blocks, action, params, act_dim,
                       graphs_per_block=None):
    """state: (B*act_dim, C) node features in graph-major row order,
       ahat_blocks: (B, act_dim, act_dim) per-graph normalized adjacency,
       action: (B, act_dim).  Returns Q values of shape (B,)."""
    C = state.shape[1]
    A = act_dim
    B = action.shape[0]
    H = params["w2"].shape[0]

    if graphs_per_block is None:
        nblk, G = _choose_blocking(B, A, C, H)
    else:
        G = _round_up(int(graphs_per_block), _g_align(A))
        nblk = (B + G - 1) // G
    B_pad = nblk * G
    lanes = B_pad * A                       # total lane count (= padded node count)
    blk_lanes = A * G                       # lanes per grid step (multiple of 128)

    # --- zero-pad the batch to a whole number of blocks -------------------------
    xs = jnp.zeros((B_pad * A, C), jnp.float32).at[:B * A].set(state.astype(jnp.float32))
    ac = jnp.zeros((B_pad, A), jnp.float32).at[:B].set(action.astype(jnp.float32))
    ah = jnp.zeros((B_pad, A, A), jnp.float32).at[:B].set(ahat_blocks.astype(jnp.float32))

    # --- node-minor, local-node-major lane layout: lane = blk*A*G + a*G + g -----
    x_t = xs.reshape(nblk, G, A, C).transpose(3, 0, 2, 1).reshape(C, lanes)
    a_t = ac.reshape(nblk, G, A).transpose(0, 2, 1).reshape(1, lanes)
    x_aug = jnp.concatenate([x_t, a_t], axis=0)                        # (C+1, lanes)

    # Rotation-friendly coefficient packing: coeff[d, lane(a,g)] = ahat[g,a,(a-d)%A]
    ar = jnp.arange(A)
    src_idx = (ar[:, None] - ar[None, :]) % A                          # [a, d]
    ahg = jnp.take_along_axis(ah, jnp.broadcast_to(src_idx[None], (B_pad, A, A)), axis=2)
    coeff = ahg.reshape(nblk, G, A, A).transpose(3, 0, 2, 1).reshape(A, lanes)

    # --- weights transposed for the node-minor layout + packed column params ----
    wgT = params["wg"].T.astype(jnp.float32)                           # (C, C)
    w1T = params["w1x"].T.astype(jnp.float32)                          # (H, C)
    w2T = params["w2"].T.astype(jnp.float32)                           # (H, H)

    def col(v):                                                        # (1,k) -> (H,1)
        out = jnp.zeros((H, 1), jnp.float32)
        return out.at[:v.shape[1], 0].set(v[0].astype(jnp.float32))

    colpack = jnp.concatenate(
        [col(params["bg"]), col(params["w1a"]), col(params["b1"]),
         col(params["b2"]), col(params["w3"].reshape(1, H)), col(params["b3"])],
        axis=1)                                                        # (H, 6)

    # --- cost estimate + VMEM budget --------------------------------------------
    Npad = B_pad * A
    flops = Npad * (2 * C * C + 2 * A * C + 2 * C * H + 2 * H + 2 * H * H + H) + 2 * B_pad * H
    bytes_accessed = 4 * ((C + 1) * Npad + A * Npad + B_pad
                          + C * C + H * C + H * H + 6 * H)
    est = _per_graph_vmem_bytes(C, A, H) * G
    vmem_limit = int(min(60 * 1024 * 1024, max(32 * 1024 * 1024, 3 * est)))

    kernel = functools.partial(_gnn_critic_kernel, C=C, A=A, G=G)
    out = pl.pallas_call(
        kernel,
        out_shape=jax.ShapeDtypeStruct((nblk, 1, G), jnp.float32),
        grid=(nblk,),
        in_specs=[
            pl.BlockSpec((C + 1, blk_lanes), lambda i: (0, i)),        # state + action
            pl.BlockSpec((A, blk_lanes), lambda i: (0, i)),            # GCN coefficients
            pl.BlockSpec((C, C), lambda i: (0, 0)),                    # Wg^T
            pl.BlockSpec((H, C), lambda i: (0, 0)),                    # W1x^T
            pl.BlockSpec((H, H), lambda i: (0, 0)),                    # W2^T
            pl.BlockSpec((H, 6), lambda i: (0, 0)),                    # packed column params
        ],
        out_specs=pl.BlockSpec((1, 1, G), lambda i: (i, 0, 0)),        # lane-dense Q row
        compiler_params=pltpu.CompilerParams(
            dimension_semantics=("parallel",),
            vmem_limit_bytes=vmem_limit),
        cost_estimate=pl.CostEstimate(flops=int(flops), transcendentals=0,
                                      bytes_accessed=int(bytes_accessed)),
    )(x_aug, coeff, wgT, w1T, w2T, colpack)

    return out.reshape(B_pad)[:B]


# ----------------------------------------------------------------------------
# Glue: normalized adjacency (GCNConv semantics) from edge_index
# ----------------------------------------------------------------------------
def build_normalized_adjacency_blocks(edge_index, batch, act_dim):
    """Per-graph A_hat = D^{-1/2}(A + I)D^{-1/2}.  Edges are assumed to stay
    inside one graph (true for this environment); cross-graph edges are dropped
    explicitly instead of being silently mis-bucketed."""
    src, dst = edge_index
    same = (src // act_dim) == (dst // act_dim)
    w = jnp.where(same, 1.0, 0.0)
    adj = jnp.zeros((batch, act_dim, act_dim), jnp.float32)
    adj = adj.at[dst // act_dim, dst % act_dim, src % act_dim].add(w)
    adj = adj + jnp.eye(act_dim, dtype=jnp.float32)[None, :, :]
    deg = jnp.sum(adj, axis=-1)
    dinv = jnp.where(deg > 0, 1.0 / jnp.sqrt(deg), 0.0)
    return dinv[:, :, None] * adj * dinv[:, None, :]


def build_normalized_adjacency_dense(edge_index, num_nodes):
    """Dense (N, N) A_hat — reference path only."""
    src, dst = edge_index
    adj = jnp.zeros((num_nodes, num_nodes), jnp.float32)
    adj = adj.at[dst, src].add(1.0)
    adj = adj + jnp.eye(num_nodes, dtype=jnp.float32)
    deg = jnp.sum(adj, axis=1)
    dinv = jnp.where(deg > 0, 1.0 / jnp.sqrt(deg), 0.0)
    return dinv[:, None] * adj * dinv[None, :]


def init_params(key, in_channels, hidden_size):
    ks = jax.random.split(key, 8)
    C, H = in_channels, hidden_size
    s = 0.1
    return {
        "wg":  s * jax.random.normal(ks[0], (C, C), jnp.float32),
        "bg":  s * jax.random.normal(ks[1], (1, C), jnp.float32),
        "w1x": s * jax.random.normal(ks[2], (C, H), jnp.float32),
        "w1a": s * jax.random.normal(ks[3], (1, H), jnp.float32),
        "b1":  s * jax.random.normal(ks[4], (1, H), jnp.float32),
        "w2":  s * jax.random.normal(ks[5], (H, H), jnp.float32),
        "b2":  s * jax.random.normal(ks[6], (1, H), jnp.float32),
        "w3":  s * jax.random.normal(ks[7], (H, 1), jnp.float32),
        "b3":  jnp.zeros((1, 1), jnp.float32),
    }


def reference_forward(state, a_hat_dense, action, params, act_dim):
    """Pure-JAX mirror of the PyTorch forward (dense adjacency, f32)."""
    C = state.shape[1]
    out = jax.nn.relu(a_hat_dense @ (state @ params["wg"]) + params["bg"])
    x = out + state
    x = x.reshape(-1, act_dim, C)
    concat = jnp.concatenate([x, action[..., None]], axis=-1)
    w1 = jnp.concatenate([params["w1x"], params["w1a"]], axis=0)        # (C+1, H)
    h1 = jax.nn.relu(concat @ w1 + params["b1"])
    h2 = jax.nn.relu(h1 @ params["w2"] + params["b2"])
    pooled = jnp.sum(h2, axis=1)
    return (pooled @ params["w3"] + params["b3"])[:, 0]


if __name__ == "__main__":
    # Small shapes consistent with the module: act_dim=16 nodes per graph.
    in_channels = 4
    hidden_size = 32
    act_dim = 16
    batch = 2
    num_nodes = batch * act_dim

    key = jax.random.PRNGKey(0)
    k_state, k_action, k_params = jax.random.split(key, 3)

    state = jax.random.normal(k_state, (num_nodes, in_channels), jnp.float32)
    action = jax.random.uniform(k_action, (batch, act_dim), jnp.float32)

    # Deterministic edge_index: bidirectional ring inside each graph.
    src_list, dst_list = [], []
    for b in range(batch):
        base = b * act_dim
        for i in range(act_dim):
            j = (i + 1) % act_dim
            src_list += [base + i, base + j]
            dst_list += [base + j, base + i]
    edge_index = jnp.array([src_list, dst_list], dtype=jnp.int32)

    ahat_blocks = build_normalized_adjacency_blocks(edge_index, batch, act_dim)
    params = init_params(k_params, in_channels, hidden_size)

    # Reference: dense-adjacency pure-JAX mirror of the PyTorch forward.
    a_hat_dense = build_normalized_adjacency_dense(edge_index, num_nodes)
    q_ref = reference_forward(state, a_hat_dense, action, params, act_dim)

    q = gnn_critic_forward(state, ahat_blocks, action, params, act_dim)
    q = jax.block_until_ready(q)
    np.testing.assert_allclose(np.asarray(q), np.asarray(q_ref),
                               rtol=1e-4, atol=1e-5)

    print("KERNEL_OK")
</pallas_src>

<mosaic_0001>
module attributes {stable_mosaic.version = 11 : i64} {
  func.func @_gnn_critic_kernel(%arg0: i32, %arg1: memref<5x128xf32, #tpu.memory_space<vmem>>, %arg2: memref<16x128xf32, #tpu.memory_space<vmem>>, %arg3: memref<4x4xf32, #tpu.memory_space<vmem>>, %arg4: memref<32x4xf32, #tpu.memory_space<vmem>>, %arg5: memref<32x32xf32, #tpu.memory_space<vmem>>, %arg6: memref<32x6xf32, #tpu.memory_space<vmem>>, %arg7: memref<1x1x8xf32, #tpu.memory_space<vmem>>) attributes {dimension_semantics = [#tpu.dimension_semantics<parallel>], iteration_bounds = array<i64: 1>, scalar_prefetch = 0 : i64, scratch_operands = 0 : i64, tpu.core_type = #tpu.core_type<tc>, window_params = [{transform_indices = @transform_0, window_bounds = array<i64: 5, 128>}, {transform_indices = @transform_1, window_bounds = array<i64: 16, 128>}, {pipeline_mode = #tpu.pipeline_mode<synchronous>, transform_indices = @transform_2, window_bounds = array<i64: 4, 4>}, {pipeline_mode = #tpu.pipeline_mode<synchronous>, transform_indices = @transform_3, window_bounds = array<i64: 32, 4>}, {pipeline_mode = #tpu.pipeline_mode<synchronous>, transform_indices = @transform_4, window_bounds = array<i64: 32, 32>}, {pipeline_mode = #tpu.pipeline_mode<synchronous>, transform_indices = @transform_5, window_bounds = array<i64: 32, 6>}, {transform_indices = @transform_6, window_bounds = array<i64: 1, 1, 8>}]} {
    %c0 = arith.constant 0 : index
    %c0_0 = arith.constant 0 : index
    %0 = vector.load %arg1[%c0, %c0_0] : memref<5x128xf32, #tpu.memory_space<vmem>>, vector<5x128xf32>
    %1 = vector.extract_strided_slice %0 {offsets = [0, 0], sizes = [4, 128], strides = [1, 1]} : vector<5x128xf32> to vector<4x128xf32>
    %2 = vector.extract_strided_slice %0 {offsets = [4, 0], sizes = [1, 128], strides = [1, 1]} : vector<5x128xf32> to vector<1x128xf32>
    %c0_1 = arith.constant 0 : index
    %c0_2 = arith.constant 0 : index
    %3 = vector.load %arg6[%c0_1, %c0_2] : memref<32x6xf32, #tpu.memory_space<vmem>>, vector<4x1xf32>
    %c0_3 = arith.constant 0 : index
    %c1 = arith.constant 1 : index
    %4 = vector.load %arg6[%c0_3, %c1] : memref<32x6xf32, #tpu.memory_space<vmem>>, vector<32x1xf32>
    %c0_4 = arith.constant 0 : index
    %c2 = arith.constant 2 : index
    %5 = vector.load %arg6[%c0_4, %c2] : memref<32x6xf32, #tpu.memory_space<vmem>>, vector<32x1xf32>
    %c0_5 = arith.constant 0 : index
    %c3 = arith.constant 3 : index
    %6 = vector.load %arg6[%c0_5, %c3] : memref<32x6xf32, #tpu.memory_space<vmem>>, vector<32x1xf32>
    %c0_6 = arith.constant 0 : index
    %c4 = arith.constant 4 : index
    %7 = vector.load %arg6[%c0_6, %c4] : memref<32x6xf32, #tpu.memory_space<vmem>>, vector<32x1xf32>
    %c0_7 = arith.constant 0 : index
    %c5 = arith.constant 5 : index
    %8 = vector.load %arg6[%c0_7, %c5] : memref<32x6xf32, #tpu.memory_space<vmem>>, vector<1x1xf32>
    %c0_8 = arith.constant 0 : index
    %c0_9 = arith.constant 0 : index
    %9 = vector.load %arg3[%c0_8, %c0_9] : memref<4x4xf32, #tpu.memory_space<vmem>>, vector<4x4xf32>
    %cst = arith.constant dense<0.000000e+00> : vector<4x128xf32>
    %10 = tpu.matmul %9, %1, %cst {dimension_numbers = #tpu.dot_dimension_numbers<[1], [0], [0], [1], [0, 0, 1, 1], [], []>} : vector<4x4xf32>, vector<4x128xf32>, vector<4x128xf32> -> vector<4x128xf32>
    %c0_10 = arith.constant 0 : index
    %c0_11 = arith.constant 0 : index
    %11 = vector.load %arg2[%c0_10, %c0_11] : memref<16x128xf32, #tpu.memory_space<vmem>>, vector<16x128xf32>
    %12 = vector.extract_strided_slice %11 {offsets = [0, 0], sizes = [1, 128], strides = [1, 1]} : vector<16x128xf32> to vector<1x128xf32>
    %13 = vector.broadcast %12 : vector<1x128xf32> to vector<4x128xf32>
    %14 = arith.mulf %13, %10 : vector<4x128xf32>
    %15 = vector.extract_strided_slice %11 {offsets = [1, 0], sizes = [1, 128], strides = [1, 1]} : vector<16x128xf32> to vector<1x128xf32>
    %16 = vector.extract_strided_slice %10 {offsets = [0, 120], sizes = [4, 8], strides = [1, 1]} : vector<4x128xf32> to vector<4x8xf32>
    %17 = vector.extract_strided_slice %10 {offsets = [0, 0], sizes = [4, 120], strides = [1, 1]} : vector<4x128xf32> to vector<4x120xf32>
    %18 = tpu.concatenate %16, %17 in 1 : vector<4x8xf32>, vector<4x120xf32> -> vector<4x128xf32>
    %19 = vector.broadcast %15 : vector<1x128xf32> to vector<4x128xf32>
    %20 = arith.mulf %19, %18 : vector<4x128xf32>
    %21 = arith.addf %14, %20 : vector<4x128xf32>
    %22 = vector.extract_strided_slice %11 {offsets = [2, 0], sizes = [1, 128], strides = [1, 1]} : vector<16x128xf32> to vector<1x128xf32>
    %23 = vector.extract_strided_slice %10 {offsets = [0, 112], sizes = [4, 16], strides = [1, 1]} : vector<4x128xf32> to vector<4x16xf32>
    %24 = vector.extract_strided_slice %10 {offsets = [0, 0], sizes = [4, 112], strides = [1, 1]} : vector<4x128xf32> to vector<4x112xf32>
    %25 = tpu.concatenate %23, %24 in 1 : vector<4x16xf32>, vector<4x112xf32> -> vector<4x128xf32>
    %26 = vector.broadcast %22 : vector<1x128xf32> to vector<4x128xf32>
    %27 = arith.mulf %26, %25 : vector<4x128xf32>
    %28 = arith.addf %21, %27 : vector<4x128xf32>
    %29 = vector.extract_strided_slice %11 {offsets = [3, 0], sizes = [1, 128], strides = [1, 1]} : vector<16x128xf32> to vector<1x128xf32>
    %30 = vector.extract_strided_slice %10 {offsets = [0, 104], sizes = [4, 24], strides = [1, 1]} : vector<4x128xf32> to vector<4x24xf32>
    %31 = vector.extract_strided_slice %10 {offsets = [0, 0], sizes = [4, 104], strides = [1, 1]} : vector<4x128xf32> to vector<4x104xf32>
    %32 = tpu.concatenate %30, %31 in 1 : vector<4x24xf32>, vector<4x104xf32> -> vector<4x128xf32>
    %33 = vector.broadcast %29 : vector<1x128xf32> to vector<4x128xf32>
    %34 = arith.mulf %33, %32 : vector<4x128xf32>
    %35 = arith.addf %28, %34 : vector<4x128xf32>
    %36 = vector.extract_strided_slice %11 {offsets = [4, 0], sizes = [1, 128], strides = [1, 1]} : vector<16x128xf32> to vector<1x128xf32>
    %37 = vector.extract_strided_slice %10 {offsets = [0, 96], sizes = [4, 32], strides = [1, 1]} : vector<4x128xf32> to vector<4x32xf32>
    %38 = vector.extract_strided_slice %10 {offsets = [0, 0], sizes = [4, 96], strides = [1, 1]} : vector<4x128xf32> to vector<4x96xf32>
    %39 = tpu.concatenate %37, %38 in 1 : vector<4x32xf32>, vector<4x96xf32> -> vector<4x128xf32>
    %40 = vector.broadcast %36 : vector<1x128xf32> to vector<4x128xf32>
    %41 = arith.mulf %40, %39 : vector<4x128xf32>
    %42 = arith.addf %35, %41 : vector<4x128xf32>
    %43 = vector.extract_strided_slice %11 {offsets = [5, 0], sizes = [1, 128], strides = [1, 1]} : vector<16x128xf32> to vector<1x128xf32>
    %44 = vector.extract_strided_slice %10 {offsets = [0, 88], sizes = [4, 40], strides = [1, 1]} : vector<4x128xf32> to vector<4x40xf32>
    %45 = vector.extract_strided_slice %10 {offsets = [0, 0], sizes = [4, 88], strides = [1, 1]} : vector<4x128xf32> to vector<4x88xf32>
    %46 = tpu.concatenate %44, %45 in 1 : vector<4x40xf32>, vector<4x88xf32> -> vector<4x128xf32>
    %47 = vector.broadcast %43 : vector<1x128xf32> to vector<4x128xf32>
    %48 = arith.mulf %47, %46 : vector<4x128xf32>
    %49 = arith.addf %42, %48 : vector<4x128xf32>
    %50 = vector.extract_strided_slice %11 {offsets = [6, 0], sizes = [1, 128], strides = [1, 1]} : vector<16x128xf32> to vector<1x128xf32>
    %51 = vector.extract_strided_slice %10 {offsets = [0, 80], sizes = [4, 48], strides = [1, 1]} : vector<4x128xf32> to vector<4x48xf32>
    %52 = vector.extract_strided_slice %10 {offsets = [0, 0], sizes = [4, 80], strides = [1, 1]} : vector<4x128xf32> to vector<4x80xf32>
    %53 = tpu.concatenate %51, %52 in 1 : vector<4x48xf32>, vector<4x80xf32> -> vector<4x128xf32>
    %54 = vector.broadcast %50 : vector<1x128xf32> to vector<4x128xf32>
    %55 = arith.mulf %54, %53 : vector<4x128xf32>
    %56 = arith.addf %49, %55 : vector<4x128xf32>
    %57 = vector.extract_strided_slice %11 {offsets = [7, 0], sizes = [1, 128], strides = [1, 1]} : vector<16x128xf32> to vector<1x128xf32>
    %58 = vector.extract_strided_slice %10 {offsets = [0, 72], sizes = [4, 56], strides = [1, 1]} : vector<4x128xf32> to vector<4x56xf32>
    %59 = vector.extract_strided_slice %10 {offsets = [0, 0], sizes = [4, 72], strides = [1, 1]} : vector<4x128xf32> to vector<4x72xf32>
    %60 = tpu.concatenate %58, %59 in 1 : vector<4x56xf32>, vector<4x72xf32> -> vector<4x128xf32>
    %61 = vector.broadcast %57 : vector<1x128xf32> to vector<4x128xf32>
    %62 = arith.mulf %61, %60 : vector<4x128xf32>
    %63 = arith.addf %56, %62 : vector<4x128xf32>
    %64 = vector.extract_strided_slice %11 {offsets = [8, 0], sizes = [1, 128], strides = [1, 1]} : vector<16x128xf32> to vector<1x128xf32>
    %65 = vector.extract_strided_slice %10 {offsets = [0, 64], sizes = [4, 64], strides = [1, 1]} : vector<4x128xf32> to vector<4x64xf32>
    %66 = vector.extract_strided_slice %10 {offsets = [0, 0], sizes = [4, 64], strides = [1, 1]} : vector<4x128xf32> to vector<4x64xf32>
    %67 = tpu.concatenate %65, %66 in 1 : vector<4x64xf32>, vector<4x64xf32> -> vector<4x128xf32>
    %68 = vector.broadcast %64 : vector<1x128xf32> to vector<4x128xf32>
    %69 = arith.mulf %68, %67 : vector<4x128xf32>
    %70 = arith.addf %63, %69 : vector<4x128xf32>
    %71 = vector.extract_strided_slice %11 {offsets = [9, 0], sizes = [1, 128], strides = [1, 1]} : vector<16x128xf32> to vector<1x128xf32>
    %72 = vector.extract_strided_slice %10 {offsets = [0, 56], sizes = [4, 72], strides = [1, 1]} : vector<4x128xf32> to vector<4x72xf32>
    %73 = vector.extract_strided_slice %10 {offsets = [0, 0], sizes = [4, 56], strides = [1, 1]} : vector<4x128xf32> to vector<4x56xf32>
    %74 = tpu.concatenate %72, %73 in 1 : vector<4x72xf32>, vector<4x56xf32> -> vector<4x128xf32>
    %75 = vector.broadcast %71 : vector<1x128xf32> to vector<4x128xf32>
    %76 = arith.mulf %75, %74 : vector<4x128xf32>
    %77 = arith.addf %70, %76 : vector<4x128xf32>
    %78 = vector.extract_strided_slice %11 {offsets = [10, 0], sizes = [1, 128], strides = [1, 1]} : vector<16x128xf32> to vector<1x128xf32>
    %79 = vector.extract_strided_slice %10 {offsets = [0, 48], sizes = [4, 80], strides = [1, 1]} : vector<4x128xf32> to vector<4x80xf32>
    %80 = vector.extract_strided_slice %10 {offsets = [0, 0], sizes = [4, 48], strides = [1, 1]} : vector<4x128xf32> to vector<4x48xf32>
    %81 = tpu.concatenate %79, %80 in 1 : vector<4x80xf32>, vector<4x48xf32> -> vector<4x128xf32>
    %82 = vector.broadcast %78 : vector<1x128xf32> to vector<4x128xf32>
    %83 = arith.mulf %82, %81 : vector<4x128xf32>
    %84 = arith.addf %77, %83 : vector<4x128xf32>
    %85 = vector.extract_strided_slice %11 {offsets = [11, 0], sizes = [1, 128], strides = [1, 1]} : vector<16x128xf32> to vector<1x128xf32>
    %86 = vector.extract_strided_slice %10 {offsets = [0, 40], sizes = [4, 88], strides = [1, 1]} : vector<4x128xf32> to vector<4x88xf32>
    %87 = vector.extract_strided_slice %10 {offsets = [0, 0], sizes = [4, 40], strides = [1, 1]} : vector<4x128xf32> to vector<4x40xf32>
    %88 = tpu.concatenate %86, %87 in 1 : vector<4x88xf32>, vector<4x40xf32> -> vector<4x128xf32>
    %89 = vector.broadcast %85 : vector<1x128xf32> to vector<4x128xf32>
    %90 = arith.mulf %89, %88 : vector<4x128xf32>
    %91 = arith.addf %84, %90 : vector<4x128xf32>
    %92 = vector.extract_strided_slice %11 {offsets = [12, 0], sizes = [1, 128], strides = [1, 1]} : vector<16x128xf32> to vector<1x128xf32>
    %93 = vector.extract_strided_slice %10 {offsets = [0, 32], sizes = [4, 96], strides = [1, 1]} : vector<4x128xf32> to vector<4x96xf32>
    %94 = vector.extract_strided_slice %10 {offsets = [0, 0], sizes = [4, 32], strides = [1, 1]} : vector<4x128xf32> to vector<4x32xf32>
    %95 = tpu.concatenate %93, %94 in 1 : vector<4x96xf32>, vector<4x32xf32> -> vector<4x128xf32>
    %96 = vector.broadcast %92 : vector<1x128xf32> to vector<4x128xf32>
    %97 = arith.mulf %96, %95 : vector<4x128xf32>
    %98 = arith.addf %91, %97 : vector<4x128xf32>
    %99 = vector.extract_strided_slice %11 {offsets = [13, 0], sizes = [1, 128], strides = [1, 1]} : vector<16x128xf32> to vector<1x128xf32>
    %100 = vector.extract_strided_slice %10 {offsets = [0, 24], sizes = [4, 104], strides = [1, 1]} : vector<4x128xf32> to vector<4x104xf32>
    %101 = vector.extract_strided_slice %10 {offsets = [0, 0], sizes = [4, 24], strides = [1, 1]} : vector<4x128xf32> to vector<4x24xf32>
    %102 = tpu.concatenate %100, %101 in 1 : vector<4x104xf32>, vector<4x24xf32> -> vector<4x128xf32>
    %103 = vector.broadcast %99 : vector<1x128xf32> to vector<4x128xf32>
    %104 = arith.mulf %103, %102 : vector<4x128xf32>
    %105 = arith.addf %98, %104 : vector<4x128xf32>
    %106 = vector.extract_strided_slice %11 {offsets = [14, 0], sizes = [1, 128], strides = [1, 1]} : vector<16x128xf32> to vector<1x128xf32>
    %107 = vector.extract_strided_slice %10 {offsets = [0, 16], sizes = [4, 112], strides = [1, 1]} : vector<4x128xf32> to vector<4x112xf32>
    %108 = vector.extract_strided_slice %10 {offsets = [0, 0], sizes = [4, 16], strides = [1, 1]} : vector<4x128xf32> to vector<4x16xf32>
    %109 = tpu.concatenate %107, %108 in 1 : vector<4x112xf32>, vector<4x16xf32> -> vector<4x128xf32>
    %110 = vector.broadcast %106 : vector<1x128xf32> to vector<4x128xf32>
    %111 = arith.mulf %110, %109 : vector<4x128xf32>
    %112 = arith.addf %105, %111 : vector<4x128xf32>
    %113 = vector.extract_strided_slice %11 {offsets = [15, 0], sizes = [1, 128], strides = [1, 1]} : vector<16x128xf32> to vector<1x128xf32>
    %114 = vector.extract_strided_slice %10 {offsets = [0, 8], sizes = [4, 120], strides = [1, 1]} : vector<4x128xf32> to vector<4x120xf32>
    %115 = vector.extract_strided_slice %10 {offsets = [0, 0], sizes = [4, 8], strides = [1, 1]} : vector<4x128xf32> to vector<4x8xf32>
    %116 = tpu.concatenate %114, %115 in 1 : vector<4x120xf32>, vector<4x8xf32> -> vector<4x128xf32>
    %117 = vector.broadcast %113 : vector<1x128xf32> to vector<4x128xf32>
    %118 = arith.mulf %117, %116 : vector<4x128xf32>
    %119 = arith.addf %112, %118 : vector<4x128xf32>
    %120 = vector.broadcast %3 : vector<4x1xf32> to vector<4x128xf32>
    %121 = arith.addf %119, %120 : vector<4x128xf32>
    %cst_12 = arith.constant 0.000000e+00 : f32
    %122 = vector.broadcast %cst_12 : f32 to vector<4x128xf32>
    %123 = arith.maximumf %121, %122 : vector<4x128xf32>
    %124 = arith.addf %123, %1 : vector<4x128xf32>
    %c0_13 = arith.constant 0 : index
    %c0_14 = arith.constant 0 : index
    %125 = vector.load %arg4[%c0_13, %c0_14] : memref<32x4xf32, #tpu.memory_space<vmem>>, vector<32x4xf32>
    %cst_15 = arith.constant dense<0.000000e+00> : vector<32x128xf32>
    %126 = tpu.matmul %125, %124, %cst_15 {dimension_numbers = #tpu.dot_dimension_numbers<[1], [0], [0], [1], [0, 0, 1, 1], [], []>} : vector<32x4xf32>, vector<4x128xf32>, vector<32x128xf32> -> vector<32x128xf32>
    %127 = vector.broadcast %4 : vector<32x1xf32> to vector<32x128xf32>
    %128 = vector.broadcast %2 : vector<1x128xf32> to vector<32x128xf32>
    %129 = arith.mulf %127, %128 : vector<32x128xf32>
    %130 = arith.addf %126, %129 : vector<32x128xf32>
    %131 = vector.broadcast %5 : vector<32x1xf32> to vector<32x128xf32>
    %132 = arith.addf %130, %131 : vector<32x128xf32>
    %cst_16 = arith.constant 0.000000e+00 : f32
    %133 = vector.broadcast %cst_16 : f32 to vector<32x128xf32>
    %134 = arith.maximumf %132, %133 : vector<32x128xf32>
    %c0_17 = arith.constant 0 : index
    %c0_18 = arith.constant 0 : index
    %135 = vector.load %arg5[%c0_17, %c0_18] : memref<32x32xf32, #tpu.memory_space<vmem>>, vector<32x32xf32>
    %cst_19 = arith.constant dense<0.000000e+00> : vector<32x128xf32>
    %136 = tpu.matmul %135, %134, %cst_19 {dimension_numbers = #tpu.dot_dimension_numbers<[1], [0], [0], [1], [0, 0, 1, 1], [], []>} : vector<32x32xf32>, vector<32x128xf32>, vector<32x128xf32> -> vector<32x128xf32>
    %137 = vector.broadcast %6 : vector<32x1xf32> to vector<32x128xf32>
    %138 = arith.addf %136, %137 : vector<32x128xf32>
    %cst_20 = arith.constant 0.000000e+00 : f32
    %139 = vector.broadcast %cst_20 : f32 to vector<32x128xf32>
    %140 = arith.maximumf %138, %139 : vector<32x128xf32>
    %141 = vector.extract_strided_slice %140 {offsets = [0, 0], sizes = [32, 8], strides = [1, 1]} : vector<32x128xf32> to vector<32x8xf32>
    %142 = vector.extract_strided_slice %140 {offsets = [0, 8], sizes = [32, 8], strides = [1, 1]} : vector<32x128xf32> to vector<32x8xf32>
    %143 = arith.addf %141, %142 : vector<32x8xf32>
    %144 = vector.extract_strided_slice %140 {offsets = [0, 16], sizes = [32, 8], strides = [1, 1]} : vector<32x128xf32> to vector<32x8xf32>
    %145 = arith.addf %143, %144 : vector<32x8xf32>
    %146 = vector.extract_strided_slice %140 {offsets = [0, 24], sizes = [32, 8], strides = [1, 1]} : vector<32x128xf32> to vector<32x8xf32>
    %147 = arith.addf %145, %146 : vector<32x8xf32>
    %148 = vector.extract_strided_slice %140 {offsets = [0, 32], sizes = [32, 8], strides = [1, 1]} : vector<32x128xf32> to vector<32x8xf32>
    %149 = arith.addf %147, %148 : vector<32x8xf32>
    %150 = vector.extract_strided_slice %140 {offsets = [0, 40], sizes = [32, 8], strides = [1, 1]} : vector<32x128xf32> to vector<32x8xf32>
    %151 = arith.addf %149, %150 : vector<32x8xf32>
    %152 = vector.extract_strided_slice %140 {offsets = [0, 48], sizes = [32, 8], strides = [1, 1]} : vector<32x128xf32> to vector<32x8xf32>
    %153 = arith.addf %151, %152 : vector<32x8xf32>
    %154 = vector.extract_strided_slice %140 {offsets = [0, 56], sizes = [32, 8], strides = [1, 1]} : vector<32x128xf32> to vector<32x8xf32>
    %155 = arith.addf %153, %154 : vector<32x8xf32>
    %156 = vector.extract_strided_slice %140 {offsets = [0, 64], sizes = [32, 8], strides = [1, 1]} : vector<32x128xf32> to vector<32x8xf32>
    %157 = arith.addf %155, %156 : vector<32x8xf32>
    %158 = vector.extract_strided_slice %140 {offsets = [0, 72], sizes = [32, 8], strides = [1, 1]} : vector<32x128xf32> to vector<32x8xf32>
    %159 = arith.addf %157, %158 : vector<32x8xf32>
    %160 = vector.extract_strided_slice %140 {offsets = [0, 80], sizes = [32, 8], strides = [1, 1]} : vector<32x128xf32> to vector<32x8xf32>
    %161 = arith.addf %159, %160 : vector<32x8xf32>
    %162 = vector.extract_strided_slice %140 {offsets = [0, 88], sizes = [32, 8], strides = [1, 1]} : vector<32x128xf32> to vector<32x8xf32>
    %163 = arith.addf %161, %162 : vector<32x8xf32>
    %164 = vector.extract_strided_slice %140 {offsets = [0, 96], sizes = [32, 8], strides = [1, 1]} : vector<32x128xf32> to vector<32x8xf32>
    %165 = arith.addf %163, %164 : vector<32x8xf32>
    %166 = vector.extract_strided_slice %140 {offsets = [0, 104], sizes = [32, 8], strides = [1, 1]} : vector<32x128xf32> to vector<32x8xf32>
    %167 = arith.addf %165, %166 : vector<32x8xf32>
    %168 = vector.extract_strided_slice %140 {offsets = [0, 112], sizes = [32, 8], strides = [1, 1]} : vector<32x128xf32> to vector<32x8xf32>
    %169 = arith.addf %167, %168 : vector<32x8xf32>
    %170 = vector.extract_strided_slice %140 {offsets = [0, 120], sizes = [32, 8], strides = [1, 1]} : vector<32x128xf32> to vector<32x8xf32>
    %171 = arith.addf %169, %170 : vector<32x8xf32>
    %172 = vector.broadcast %7 : vector<32x1xf32> to vector<32x8xf32>
    %173 = arith.mulf %171, %172 : vector<32x8xf32>
    %cst_21 = arith.constant dense<0.000000e+00> : vector<8xf32>
    %174 = vector.multi_reduction <add>, %173, %cst_21 [0] : vector<32x8xf32> to vector<8xf32>
    %175 = vector.shape_cast %174 : vector<8xf32> to vector<1x8xf32>
    %176 = vector.broadcast %8 : vector<1x1xf32> to vector<1x8xf32>
    %177 = arith.addf %175, %176 : vector<1x8xf32>
    %178 = vector.shape_cast %177 : vector<1x8xf32> to vector<1x1x8xf32>
    %c0_22 = arith.constant 0 : index
    %c0_23 = arith.constant 0 : index
    %c0_24 = arith.constant 0 : index
    %179 = vector.load %arg7[%c0_22, %c0_23, %c0_24] : memref<1x1x8xf32, #tpu.memory_space<vmem>>, vector<1x1x8xf32>
    tpu.vector_store %arg7[%c0_22, %c0_23, %c0_24], %178 {strides = array<i32>} : memref<1x1x8xf32, #tpu.memory_space<vmem>>, vector<1x1x8xf32>,
    return
  }
  func.func @transform_0(%arg0: i32) -> (i32, i32) {
    %c0_i32 = arith.constant 0 : i32
    %c0_i32_0 = arith.constant 0 : i32
    return %c0_i32, %arg0 : i32, i32
  }
  func.func @transform_1(%arg0: i32) -> (i32, i32) {
    %c0_i32 = arith.constant 0 : i32
    %c0_i32_0 = arith.constant 0 : i32
    return %c0_i32, %arg0 : i32, i32
  }
  func.func @transform_2(%arg0: i32) -> (i32, i32) {
    %c0_i32 = arith.constant 0 : i32
    %c0_i32_0 = arith.constant 0 : i32
    %c0_i32_1 = arith.constant 0 : i32
    return %c0_i32, %c0_i32_0 : i32, i32
  }
  func.func @transform_3(%arg0: i32) -> (i32, i32) {
    %c0_i32 = arith.constant 0 : i32
    %c0_i32_0 = arith.constant 0 : i32
    %c0_i32_1 = arith.constant 0 : i32
    return %c0_i32, %c0_i32_0 : i32, i32
  }
  func.func @transform_4(%arg0: i32) -> (i32, i32) {
    %c0_i32 = arith.constant 0 : i32
    %c0_i32_0 = arith.constant 0 : i32
    %c0_i32_1 = arith.constant 0 : i32
    return %c0_i32, %c0_i32_0 : i32, i32
  }
  func.func @transform_5(%arg0: i32) -> (i32, i32) {
    %c0_i32 = arith.constant 0 : i32
    %c0_i32_0 = arith.constant 0 : i32
    %c0_i32_1 = arith.constant 0 : i32
    return %c0_i32, %c0_i32_0 : i32, i32
  }
  func.func @transform_6(%arg0: i32) -> (i32, i32, i32) {
    %c0_i32 = arith.constant 0 : i32
    %c0_i32_0 = arith.constant 0 : i32
    %c0_i32_1 = arith.constant 0 : i32
    return %arg0, %c0_i32, %c0_i32_0 : i32, i32, i32
  }
}

</mosaic_0001>

<llo_original>
// kernel: tpu_custom_call.1
$region0: #{tpu_custom_call.1}
  #allocation0 [shape = 'u32[]', space=smem, size = 0x4, offset = 0x4, fixed_abs, tag = 'smem constant byte address 0x4 - core index']
  #allocation1 [shape = 'u32[144,128]{1,0:T(1,128)}', space=vmem, size = 0x12000, scoped, tag = 'internal scratch']
  %s0 = inlined_call_operand.vmem [shape: f32[5,128], index: 0, kind: input, shape index: {}]
  %s1 = inlined_call_operand.vmem [shape: f32[16,128], index: 1, kind: input, shape index: {}]
  %s2 = inlined_call_operand.vmem [shape: f32[4,4], index: 2, kind: input, shape index: {}]
  %s3 = inlined_call_operand.vmem [shape: f32[32,4], index: 3, kind: input, shape index: {}]
  %s4 = inlined_call_operand.vmem [shape: f32[32,32], index: 4, kind: input, shape index: {}]
  %s5 = inlined_call_operand.vmem [shape: f32[32,6], index: 5, kind: input, shape index: {}]
  %s6 = inlined_call_operand.hbm [shape: f32[1,1,8], index: 6, kind: output, shape index: {}]
  %s7 = sld [smem:[#allocation0]]
  $region34: #{tpu_custom_call.1} parent=0
    _
  %s9 = ssub.s32 1, %s7
  %s10 = scalar_select 0, %s9, %s7
  $region1: #{tpu_custom_call.1} parent=0
    #allocation2 [shape = 'u8[512]{0}', space=vmem, size = 0x400, scoped, tag = 'output window, operand 0, single buffered']
    #allocation3 [shape = 's32[1]{0}', space=sflag, size = 0x4, scoped, tag = 'scoped memory for tpu_custom_call.1']
    %11 = vsyncpa [#allocation3], 0
    // Predicated region
    $region2: #{tpu_custom_call.1} parent=1 // pred_check
      _
    $region3: #{tpu_custom_call.1} parent=1 // pred_check_branch
      %13 = sbr.rel (0) target = $region5
    $region4: #{tpu_custom_call.1} parent=1 // pred_region
      _
    $region5: #{tpu_custom_call.1} parent=1 // pred_fallthru
      _
    // Predicated region
    $region6: #{tpu_custom_call.1} parent=1 // pred_check
      _
    $region7: #{tpu_custom_call.1} parent=1 // pred_check_branch
      %15 = sbr.rel (0) target = $region9
    $region8: #{tpu_custom_call.1} parent=1 // pred_region
      _
    $region9: #{tpu_custom_call.1} parent=1 // pred_fallthru
      _
    // Predicated region
    $region10: #{tpu_custom_call.1} parent=1 // pred_check
      _
    $region11: #{tpu_custom_call.1} parent=1 // pred_check_branch
      %17 = sbr.rel (0) target = $region13
    $region12: #{tpu_custom_call.1} parent=1 // pred_region
      _
    $region13: #{tpu_custom_call.1} parent=1 // pred_fallthru
      _
    // Predicated region
    $region14: #{tpu_custom_call.1} parent=1 // pred_check
      _
    $region15: #{tpu_custom_call.1} parent=1 // pred_check_branch
      %19 = sbr.rel (0) target = $region17
    $region16: #{tpu_custom_call.1} parent=1 // pred_region
      _
    $region17: #{tpu_custom_call.1} parent=1 // pred_fallthru
      _
    // Predicated region
    $region18: #{tpu_custom_call.1} parent=1 // pred_check
      _
    $region19: #{tpu_custom_call.1} parent=1 // pred_check_branch
      %21 = sbr.rel (0) target = $region21
    $region20: #{tpu_custom_call.1} parent=1 // pred_region
      _
    $region21: #{tpu_custom_call.1} parent=1 // pred_fallthru
      _
    // Predicated region
    $region22: #{tpu_custom_call.1} parent=1 // pred_check
      _
    $region23: #{tpu_custom_call.1} parent=1 // pred_check_branch
      %23 = sbr.rel (0) target = $region25
    $region24: #{tpu_custom_call.1} parent=1 // pred_region
      _
    $region25: #{tpu_custom_call.1} parent=1 // pred_fallthru
      _
    %v24 = vld [vmem:[%s0] sm:$0x1f]
    %v25 = vld [vmem:[%s5] sm:$0xf]
    %v26 = vld [vmem:[%s5] sm:$0xff]
    %v27 = vld [vmem:[%s5 + $0x8] sm:$0xff]
    %v28 = vld [vmem:[%s5 + $0x10] sm:$0xff]
    %v29 = vld [vmem:[%s5 + $0x18] sm:$0xff]
    %v30 = vld [vmem:[%s5] sm:$0x1]
    %v31 = vld [vmem:[%s2] sm:$0xf]
    %vm32 = vcmask 31744
    %v34 = vsel %vm32, %v31, 0
    %vm36 = vcmask 1043456
    %v38 = vsel %vm36, %v24, 0
    %40 = vmatprep.subr.mxu0 0.0
    %41 = vmatpush1.msra.mxu0 %v38
    %42 = vmatprep.subr.mxu0 0.0
    %43 = vmatpush1.msra.mxu0 0.0
    %44 = vmatprep.subr.mxu0 0.0
    %45 = vmatpush1.msra.mxu0 0.0
    %46 = vmatprep.subr.mxu0 0.0
    %47 = vmatpush1.msra.mxu0 0.0
    %48 = vmatprep.subr.mxu0 0.0
    %49 = vmatpush1.msra.mxu0 0.0
    %50 = vmatprep.subr.mxu0 0.0
    %51 = vmatpush1.msra.mxu0 0.0
    %52 = vmatprep.subr.mxu0 0.0
    %53 = vmatpush1.msra.mxu0 0.0
    %54 = vmatprep.subr.mxu0 0.0
    %55 = vmatpush1.msra.mxu0 0.0
    %56 = vmatprep.subr.mxu0 0.0
    %57 = vmatpush1.msra.mxu0 0.0
    %58 = vmatprep.subr.mxu0 0.0
    %59 = vmatpush1.msra.mxu0 0.0
    %60 = vmatprep.subr.mxu0 0.0
    %61 = vmatpush1.msra.mxu0 0.0
    %62 = vmatprep.subr.mxu0 0.0
    %63 = vmatpush1.msra.mxu0 0.0
    %64 = vmatprep.subr.mxu0 0.0
    %65 = vmatpush1.msra.mxu0 0.0
    %66 = vmatprep.subr.mxu0 0.0
    %67 = vmatpush1.msra.mxu0 0.0
    %68 = vmatprep.subr.mxu0 0.0
    %69 = vmatpush1.msra.mxu0 0.0
    %70 = vmatprep.subr.mxu0 0.0
    %71 = vmatpush1.msra.mxu0 0.0
    %72 = vmatprep.subr.mxu0 0.0
    %73 = vmatpush1.msra.mxu0 0.0
    %74 = vmatprep.subr.mxu0 0.0
    %75 = vmatpush1.msra.mxu0 0.0
    %76 = vmatprep.subr.mxu0 0.0
    %77 = vmatpush1.msra.mxu0 0.0
    %78 = vmatprep.subr.mxu0 0.0
    %79 = vmatpush1.msra.mxu0 0.0
    %80 = vmatprep.subr.mxu0 0.0
    %81 = vmatpush1.msra.mxu0 0.0
    %82 = vmatprep.subr.mxu0 0.0
    %83 = vmatpush1.msra.mxu0 0.0
    %84 = vmatprep.subr.mxu0 0.0
    %85 = vmatpush1.msra.mxu0 0.0
    %86 = vmatprep.subr.mxu0 0.0
    %87 = vmatpush1.msra.mxu0 0.0
    %88 = vmatprep.subr.mxu0 0.0
    %89 = vmatpush1.msra.mxu0 0.0
    %90 = vmatprep.subr.mxu0 0.0
    %91 = vmatpush1.msra.mxu0 0.0
    %92 = vmatprep.subr.mxu0 0.0
    %93 = vmatpush1.msra.mxu0 0.0
    %94 = vmatprep.subr.mxu0 0.0
    %95 = vmatpush1.msra.mxu0 0.0
    %96 = vmatprep.subr.mxu0 0.0
    %97 = vmatpush1.msra.mxu0 0.0
    %98 = vmatprep.subr.mxu0 0.0
    %99 = vmatpush1.msra.mxu0 0.0
    %100 = vmatprep.subr.mxu0 0.0
    %101 = vmatpush1.msra.mxu0 0.0
    %102 = vmatprep.subr.mxu0 0.0
    %103 = vmatpush1.msra.mxu0 0.0
    %104 = vmatprep.mubr.f32.mxu0 0.0
    %105 = vmatmul.mubr.f32.gmra.mrb[0].mxu0 %v34
    %v106 = vpop.f32.mrb[0].mxu0
    %v107 = vadd.f32 0.0, %v106
    %v108 = vpop.f32.mrb[0].mxu0
    %109 = vdwg.mxu0
    %v110 = vld [vmem:[%s1] sm:$0xff]
    %v111 = vld [vmem:[%s1 + $0x8] sm:$0xff]
    %v112 = vlaneseq
    %v113 = vshrl.u32 %v112, 7
    %v114 = vsub.s32 0, %v113
    %v115 = vrot.slane %v110, %v114
    %v116 = vmul.f32 %v115, %v107
    %118 = vrot.lane.b32.xlu0 %v107, 8
    %v119 = vpop.permute.xlu0 %118
    %vm121 = vcmask 64512
    %v122 = vlaneseq
    %v123 = vshrl.u32 %v122, 7
    %v124 = vsub.s32 1, %v123
    %v125 = vrot.slane %v110, %v124
    %v126 = vmul.f32 %v125, %v119
    %v127 = vadd.f32 %v116, %v126
    %128 = vrot.lane.b32.xlu0 %v107, 16
    %v129 = vpop.permute.xlu0 %128
    %v131 = vlaneseq
    %v132 = vshrl.u32 %v131, 7
    %v133 = vsub.s32 2, %v132
    %v134 = vrot.slane %v110, %v133
    %v135 = vmul.f32 %v134, %v129
    %v136 = vadd.f32 %v127, %v135
    %137 = vrot.lane.b32.xlu0 %v107, 24
    %v138 = vpop.permute.xlu0 %137
    %v140 = vlaneseq
    %v141 = vshrl.u32 %v140, 7
    %v142 = vsub.s32 3, %v141
    %v143 = vrot.slane %v110, %v142
    %v144 = vmul.f32 %v143, %v138
    %v145 = vadd.f32 %v136, %v144
    %146 = vrot.lane.b32.xlu0 %v107, 32
    %v147 = vpop.permute.xlu0 %146
    %vm149 = vcmask 261120
    %v150 = vlaneseq
    %v151 = vshrl.u32 %v150, 7
    %v152 = vsub.s32 4, %v151
    %v153 = vrot.slane %v110, %v152
    %v154 = vmul.f32 %v153, %v147
    %v155 = vadd.f32 %v145, %v154
    %156 = vrot.lane.b32.xlu0 %v107, 40
    %v157 = vpop.permute.xlu0 %156
    %v159 = vlaneseq
    %v160 = vshrl.u32 %v159, 7
    %v161 = vsub.s32 5, %v160
    %v162 = vrot.slane %v110, %v161
    %v163 = vmul.f32 %v162, %v157
    %v164 = vadd.f32 %v155, %v163
    %165 = vrot.lane.b32.xlu0 %v107, 48
    %v166 = vpop.permute.xlu0 %165
    %v168 = vlaneseq
    %v169 = vshrl.u32 %v168, 7
    %v170 = vsub.s32 6, %v169
    %v171 = vrot.slane %v110, %v170
    %v172 = vmul.f32 %v171, %v166
    %v173 = vadd.f32 %v164, %v172
    %174 = vrot.lane.b32.xlu0 %v107, 56
    %v175 = vpop.permute.xlu0 %174
    %v177 = vlaneseq
    %v178 = vshrl.u32 %v177, 7
    %v179 = vsub.s32 7, %v178
    %v180 = vrot.slane %v110, %v179
    %v181 = vmul.f32 %v180, %v175
    %v182 = vadd.f32 %v173, %v181
    %183 = vrot.lane.b32.xlu0 %v107, 64
    %v184 = vpop.permute.xlu0 %183
    %v186 = vlaneseq
    %v187 = vshrl.u32 %v186, 7
    %v188 = vsub.s32 0, %v187
    %v189 = vrot.slane %v111, %v188
    %v190 = vmul.f32 %v189, %v184
    %v191 = vadd.f32 %v182, %v190
    %192 = vrot.lane.b32.xlu0 %v107, 72
    %v193 = vpop.permute.xlu0 %192
    %v195 = vlaneseq
    %v196 = vshrl.u32 %v195, 7
    %v197 = vsub.s32 1, %v196
    %v198 = vrot.slane %v111, %v197
    %v199 = vmul.f32 %v198, %v193
    %v200 = vadd.f32 %v191, %v199
    %201 = vrot.lane.b32.xlu0 %v107, 80
    %v202 = vpop.permute.xlu0 %201
    %v204 = vlaneseq
    %v205 = vshrl.u32 %v204, 7
    %v206 = vsub.s32 2, %v205
    %v207 = vrot.slane %v111, %v206
    %v208 = vmul.f32 %v207, %v202
    %v209 = vadd.f32 %v200, %v208
    %210 = vrot.lane.b32.xlu0 %v107, 88
    %v211 = vpop.permute.xlu0 %210
    %v213 = vlaneseq
    %v214 = vshrl.u32 %v213, 7
    %v215 = vsub.s32 3, %v214
    %v216 = vrot.slane %v111, %v215
    %v217 = vmul.f32 %v216, %v211
    %v218 = vadd.f32 %v209, %v217
    %219 = vrot.lane.b32.xlu0 %v107, 96
    %v220 = vpop.permute.xlu0 %219
    %v222 = vlaneseq
    %v223 = vshrl.u32 %v222, 7
    %v224 = vsub.s32 4, %v223
    %v225 = vrot.slane %v111, %v224
    %v226 = vmul.f32 %v225, %v220
    %v227 = vadd.f32 %v218, %v226
    %228 = vrot.lane.b32.xlu0 %v107, 104
    %v229 = vpop.permute.xlu0 %228
    %v231 = vlaneseq
    %v232 = vshrl.u32 %v231, 7
    %v233 = vsub.s32 5, %v232
    %v234 = vrot.slane %v111, %v233
    %v235 = vmul.f32 %v234, %v229
    %v236 = vadd.f32 %v227, %v235
    %237 = vrot.lane.b32.xlu0 %v107, 112
    %v238 = vpop.permute.xlu0 %237
    %v240 = vlaneseq
    %v241 = vshrl.u32 %v240, 7
    %v242 = vsub.s32 6, %v241
    %v243 = vrot.slane %v111, %v242
    %v244 = vmul.f32 %v243, %v238
    %v245 = vadd.f32 %v236, %v244
    %246 = vrot.lane.b32.xlu0 %v107, 120
    %v247 = vpop.permute.xlu0 %246
    %v249 = vlaneseq
    %v250 = vshrl.u32 %v249, 7
    %v251 = vsub.s32 7, %v250
    %v252 = vrot.slane %v111, %v251
    %v253 = vmul.f32 %v252, %v247
    %v254 = vadd.f32 %v245, %v253
    %256 = vset.pattern.permute.xlu0 0
    %257 = vperm.xlu0 %256, %v25
    %v258 = vpop.permute.xlu0 %257
    %v260 = vadd.f32 %v254, %v258
    %v261 = vmax.f32 %v260, 0.0
    %v262 = vadd.f32 %v261, %v24
    %v263 = vld [vmem:[%s3] sm:$0xff]
    %v264 = vld [vmem:[%s3 + $0x8] sm:$0xff]
    %v265 = vld [vmem:[%s3 + $0x10] sm:$0xff]
    %v266 = vld [vmem:[%s3 + $0x18] sm:$0xff]
    %268 = vset.pattern.permute.xlu0 1
    %269 = vperm.xlu0 %268, %v26
    %v270 = vpop.permute.xlu0 %269
    %273 = vset.pattern.permute.xlu0 1
    %274 = vperm.xlu0 %273, %v27
    %v275 = vpop.permute.xlu0 %274
    %278 = vset.pattern.permute.xlu0 1
    %279 = vperm.xlu0 %278, %v28
    %v280 = vpop.permute.xlu0 %279
    %283 = vset.pattern.permute.xlu0 1
    %284 = vperm.xlu0 %283, %v29
    %v285 = vpop.permute.xlu0 %284
    %v287 = vlaneseq
    %v288 = vshrl.u32 %v287, 7
    %v289 = vsub.s32 4, %v288
    %v290 = vrot.slane %v24, %v289
    %v291 = vmul.f32 %v270, %v290
    %v292 = vmul.f32 %v275, %v290
    %v293 = vmul.f32 %v280, %v290
    %v294 = vmul.f32 %v285, %v290
    %v296 = vsel %vm32, %v263, 0
    %v299 = vsel %vm32, %v264, 0
    %v302 = vsel %vm32, %v265, 0
    %v305 = vsel %vm32, %v266, 0
    %v308 = vsel %vm36, %v262, 0
    %310 = vmatprep.subr.mxu0 0.0
    %311 = vmatpush1.msra.mxu0 %v308
    %312 = vmatprep.subr.mxu0 0.0
    %313 = vmatpush1.msra.mxu0 0.0
    %314 = vmatprep.subr.mxu0 0.0
    %315 = vmatpush1.msra.mxu0 0.0
    %316 = vmatprep.subr.mxu0 0.0
    %317 = vmatpush1.msra.mxu0 0.0
    %318 = vmatprep.subr.mxu0 0.0
    %319 = vmatpush1.msra.mxu0 0.0
    %320 = vmatprep.subr.mxu0 0.0
    %321 = vmatpush1.msra.mxu0 0.0
    %322 = vmatprep.subr.mxu0 0.0
    %323 = vmatpush1.msra.mxu0 0.0
    %324 = vmatprep.subr.mxu0 0.0
    %325 = vmatpush1.msra.mxu0 0.0
    %326 = vmatprep.subr.mxu0 0.0
    %327 = vmatpush1.msra.mxu0 0.0
    %328 = vmatprep.subr.mxu0 0.0
    %329 = vmatpush1.msra.mxu0 0.0
    %330 = vmatprep.subr.mxu0 0.0
    %331 = vmatpush1.msra.mxu0 0.0
    %332 = vmatprep.subr.mxu0 0.0
    %333 = vmatpush1.msra.mxu0 0.0
    %334 = vmatprep.subr.mxu0 0.0
    %335 = vmatpush1.msra.mxu0 0.0
    %336 = vmatprep.subr.mxu0 0.0
    %337 = vmatpush1.msra.mxu0 0.0
    %338 = vmatprep.subr.mxu0 0.0
    %339 = vmatpush1.msra.mxu0 0.0
    %340 = vmatprep.subr.mxu0 0.0
    %341 = vmatpush1.msra.mxu0 0.0
    %342 = vmatprep.subr.mxu0 0.0
    %343 = vmatpush1.msra.mxu0 0.0
    %344 = vmatprep.subr.mxu0 0.0
    %345 = vmatpush1.msra.mxu0 0.0
    %346 = vmatprep.subr.mxu0 0.0
    %347 = vmatpush1.msra.mxu0 0.0
    %348 = vmatprep.subr.mxu0 0.0
    %349 = vmatpush1.msra.mxu0 0.0
    %350 = vmatprep.subr.mxu0 0.0
    %351 = vmatpush1.msra.mxu0 0.0
    %352 = vmatprep.subr.mxu0 0.0
    %353 = vmatpush1.msra.mxu0 0.0
    %354 = vmatprep.subr.mxu0 0.0
    %355 = vmatpush1.msra.mxu0 0.0
    %356 = vmatprep.subr.mxu0 0.0
    %357 = vmatpush1.msra.mxu0 0.0
    %358 = vmatprep.subr.mxu0 0.0
    %359 = vmatpush1.msra.mxu0 0.0
    %360 = vmatprep.subr.mxu0 0.0
    %361 = vmatpush1.msra.mxu0 0.0
    %362 = vmatprep.subr.mxu0 0.0
    %363 = vmatpush1.msra.mxu0 0.0
    %364 = vmatprep.subr.mxu0 0.0
    %365 = vmatpush1.msra.mxu0 0.0
    %366 = vmatprep.subr.mxu0 0.0
    %367 = vmatpush1.msra.mxu0 0.0
    %368 = vmatprep.subr.mxu0 0.0
    %369 = vmatpush1.msra.mxu0 0.0
    %370 = vmatprep.subr.mxu0 0.0
    %371 = vmatpush1.msra.mxu0 0.0
    %372 = vmatprep.subr.mxu0 0.0
    %373 = vmatpush1.msra.mxu0 0.0
    %374 = vmatprep.mubr.f32.mxu0 0.0
    %375 = vmatmul.mubr.f32.gmra.mrb[0].mxu0 %v296
    %v376 = vpop.f32.mrb[0].mxu0
    %v377 = vadd.f32 %v291, %v376
    %v378 = vpop.f32.mrb[0].mxu0
    %379 = vmatprep.mubr.f32.mxu0 0.0
    %380 = vmatmul.mubr.f32.gmra.mrb[0].mxu0 %v299
    %v381 = vpop.f32.mrb[0].mxu0
    %v382 = vadd.f32 %v292, %v381
    %v383 = vpop.f32.mrb[0].mxu0
    %384 = vmatprep.mubr.f32.mxu0 0.0
    %385 = vmatmul.mubr.f32.gmra.mrb[0].mxu0 %v302
    %v386 = vpop.f32.mrb[0].mxu0
    %v387 = vadd.f32 %v293, %v386
    %v388 = vpop.f32.mrb[0].mxu0
    %389 = vmatprep.mubr.f32.mxu0 0.0
    %390 = vmatmul.mubr.f32.gmra.mrb[0].mxu0 %v305
    %v391 = vpop.f32.mrb[0].mxu0
    %v392 = vadd.f32 %v294, %v391
    %v393 = vpop.f32.mrb[0].mxu0
    %394 = vdwg.mxu0
    %395 = vset.pattern.permute.xlu0 2
    %396 = vperm.xlu0 %395, %v26
    %v397 = vpop.permute.xlu0 %396
    %399 = vset.pattern.permute.xlu0 2
    %400 = vperm.xlu0 %399, %v27
    %v401 = vpop.permute.xlu0 %400
    %403 = vset.pattern.permute.xlu0 2
    %404 = vperm.xlu0 %403, %v28
    %v405 = vpop.permute.xlu0 %404
    %407 = vset.pattern.permute.xlu0 2
    %408 = vperm.xlu0 %407, %v29
    %v409 = vpop.permute.xlu0 %408
    %v411 = vadd.f32 %v377, %v397
    %v412 = vadd.f32 %v382, %v401
    %v413 = vadd.f32 %v387, %v405
    %v414 = vadd.f32 %v392, %v409
    %v415 = vmax.f32 %v411, 0.0
    %v416 = vmax.f32 %v412, 0.0
    %v417 = vmax.f32 %v413, 0.0
    %v418 = vmax.f32 %v414, 0.0
    %v419 = vld [vmem:[%s4] sm:$0xff]
    %v420 = vld [vmem:[%s4 + $0x8] sm:$0xff]
    %v421 = vld [vmem:[%s4 + $0x10] sm:$0xff]
    %v422 = vld [vmem:[%s4 + $0x18] sm:$0xff]
    %423 = vset.pattern.permute.xlu0 3
    %424 = vperm.xlu0 %423, %v26
    %v425 = vpop.permute.xlu0 %424
    %427 = vset.pattern.permute.xlu0 3
    %428 = vperm.xlu0 %427, %v27
    %v429 = vpop.permute.xlu0 %428
    %431 = vset.pattern.permute.xlu0 3
    %432 = vperm.xlu0 %431, %v28
    %v433 = vpop.permute.xlu0 %432
    %435 = vset.pattern.permute.xlu0 3
    %436 = vperm.xlu0 %435, %v29
    %v437 = vpop.permute.xlu0 %436
    %v440 = vsel %vm149, %v419, 0
    %v443 = vsel %vm149, %v420, 0
    %v446 = vsel %vm149, %v421, 0
    %v449 = vsel %vm149, %v422, 0
    %451 = vmatprep.subr.mxu0 0.0
    %452 = vmatpush1.msra.mxu0 %v415
    %453 = vmatprep.subr.mxu0 0.0
    %454 = vmatpush1.msra.mxu0 %v416
    %455 = vmatprep.subr.mxu0 0.0
    %456 = vmatpush1.msra.mxu0 %v417
    %457 = vmatprep.subr.mxu0 0.0
    %458 = vmatpush1.msra.mxu0 %v418
    %459 = vmatprep.subr.mxu0 0.0
    %460 = vmatpush1.msra.mxu0 0.0
    %461 = vmatprep.subr.mxu0 0.0
    %462 = vmatpush1.msra.mxu0 0.0
    %463 = vmatprep.subr.mxu0 0.0
    %464 = vmatpush1.msra.mxu0 0.0
    %465 = vmatprep.subr.mxu0 0.0
    %466 = vmatpush1.msra.mxu0 0.0
    %467 = vmatprep.subr.mxu0 0.0
    %468 = vmatpush1.msra.mxu0 0.0
    %469 = vmatprep.subr.mxu0 0.0
    %470 = vmatpush1.msra.mxu0 0.0
    %471 = vmatprep.subr.mxu0 0.0
    %472 = vmatpush1.msra.mxu0 0.0
    %473 = vmatprep.subr.mxu0 0.0
    %474 = vmatpush1.msra.mxu0 0.0
    %475 = vmatprep.subr.mxu0 0.0
    %476 = vmatpush1.msra.mxu0 0.0
    %477 = vmatprep.subr.mxu0 0.0
    %478 = vmatpush1.msra.mxu0 0.0
    %479 = vmatprep.subr.mxu0 0.0
    %480 = vmatpush1.msra.mxu0 0.0
    %481 = vmatprep.subr.mxu0 0.0
    %482 = vmatpush1.msra.mxu0 0.0
    %483 = vmatprep.subr.mxu0 0.0
    %484 = vmatpush1.msra.mxu0 0.0
    %485 = vmatprep.subr.mxu0 0.0
    %486 = vmatpush1.msra.mxu0 0.0
    %487 = vmatprep.subr.mxu0 0.0
    %488 = vmatpush1.msra.mxu0 0.0
    %489 = vmatprep.subr.mxu0 0.0
    %490 = vmatpush1.msra.mxu0 0.0
    %491 = vmatprep.subr.mxu0 0.0
    %492 = vmatpush1.msra.mxu0 0.0
    %493 = vmatprep.subr.mxu0 0.0
    %494 = vmatpush1.msra.mxu0 0.0
    %495 = vmatprep.subr.mxu0 0.0
    %496 = vmatpush1.msra.mxu0 0.0
    %497 = vmatprep.subr.mxu0 0.0
    %498 = vmatpush1.msra.mxu0 0.0
    %499 = vmatprep.subr.mxu0 0.0
    %500 = vmatpush1.msra.mxu0 0.0
    %501 = vmatprep.subr.mxu0 0.0
    %502 = vmatpush1.msra.mxu0 0.0
    %503 = vmatprep.subr.mxu0 0.0
    %504 = vmatpush1.msra.mxu0 0.0
    %505 = vmatprep.subr.mxu0 0.0
    %506 = vmatpush1.msra.mxu0 0.0
    %507 = vmatprep.subr.mxu0 0.0
    %508 = vmatpush1.msra.mxu0 0.0
    %509 = vmatprep.subr.mxu0 0.0
    %510 = vmatpush1.msra.mxu0 0.0
    %511 = vmatprep.subr.mxu0 0.0
    %512 = vmatpush1.msra.mxu0 0.0
    %513 = vmatprep.subr.mxu0 0.0
    %514 = vmatpush1.msra.mxu0 0.0
    %515 = vmatprep.mubr.f32.mxu0 0.0
    %516 = vmatmul.mubr.f32.gmra.mrb[0].mxu0 %v440
    %v517 = vpop.f32.mrb[0].mxu0
    %v518 = vadd.f32 %v425, %v517
    %v519 = vpop.f32.mrb[0].mxu0
    %520 = vmatprep.mubr.f32.mxu0 0.0
    %521 = vmatmul.mubr.f32.gmra.mrb[0].mxu0 %v443
    %v522 = vpop.f32.mrb[0].mxu0
    %v523 = vadd.f32 %v429, %v522
    %v524 = vpop.f32.mrb[0].mxu0
    %525 = vmatprep.mubr.f32.mxu0 0.0
    %526 = vmatmul.mubr.f32.gmra.mrb[0].mxu0 %v446
    %v527 = vpop.f32.mrb[0].mxu0
    %v528 = vadd.f32 %v433, %v527
    %v529 = vpop.f32.mrb[0].mxu0
    %530 = vmatprep.mubr.f32.mxu0 0.0
    %531 = vmatmul.mubr.f32.gmra.mrb[0].mxu0 %v449
    %v532 = vpop.f32.mrb[0].mxu0
    %v533 = vadd.f32 %v437, %v532
    %v534 = vpop.f32.mrb[0].mxu0
    %535 = vdwg.mxu0
    %v536 = vmax.f32 %v518, 0.0
    %v537 = vmax.f32 %v523, 0.0
    %v538 = vmax.f32 %v528, 0.0
    %v539 = vmax.f32 %v533, 0.0
    %544 = vrot.lane.b32.xlu0 %v536, 120
    %v545 = vpop.permute.xlu0 %544
    %546 = vrot.lane.b32.xlu0 %v537, 120
    %v547 = vpop.permute.xlu0 %546
    %548 = vrot.lane.b32.xlu0 %v538, 120
    %v549 = vpop.permute.xlu0 %548
    %550 = vrot.lane.b32.xlu0 %v539, 120
    %v551 = vpop.permute.xlu0 %550
    %v556 = vadd.f32 %v536, %v545
    %v557 = vadd.f32 %v537, %v547
    %v558 = vadd.f32 %v538, %v549
    %v559 = vadd.f32 %v539, %v551
    %560 = vrot.lane.b32.xlu0 %v536, 112
    %v561 = vpop.permute.xlu0 %560
    %562 = vrot.lane.b32.xlu0 %v537, 112
    %v563 = vpop.permute.xlu0 %562
    %564 = vrot.lane.b32.xlu0 %v538, 112
    %v565 = vpop.permute.xlu0 %564
    %566 = vrot.lane.b32.xlu0 %v539, 112
    %v567 = vpop.permute.xlu0 %566
    %v572 = vadd.f32 %v556, %v561
    %v573 = vadd.f32 %v557, %v563
    %v574 = vadd.f32 %v558, %v565
    %v575 = vadd.f32 %v559, %v567
    %576 = vrot.lane.b32.xlu0 %v536, 104
    %v577 = vpop.permute.xlu0 %576
    %578 = vrot.lane.b32.xlu0 %v537, 104
    %v579 = vpop.permute.xlu0 %578
    %580 = vrot.lane.b32.xlu0 %v538, 104
    %v581 = vpop.permute.xlu0 %580
    %582 = vrot.lane.b32.xlu0 %v539, 104
    %v583 = vpop.permute.xlu0 %582
    %v588 = vadd.f32 %v572, %v577
    %v589 = vadd.f32 %v573, %v579
    %v590 = vadd.f32 %v574, %v581
    %v591 = vadd.f32 %v575, %v583
    %592 = vrot.lane.b32.xlu0 %v536, 96
    %v593 = vpop.permute.xlu0 %592
    %594 = vrot.lane.b32.xlu0 %v537, 96
    %v595 = vpop.permute.xlu0 %594
    %596 = vrot.lane.b32.xlu0 %v538, 96
    %v597 = vpop.permute.xlu0 %596
    %598 = vrot.lane.b32.xlu0 %v539, 96
    %v599 = vpop.permute.xlu0 %598
    %v604 = vadd.f32 %v588, %v593
    %v605 = vadd.f32 %v589, %v595
    %v606 = vadd.f32 %v590, %v597
    %v607 = vadd.f32 %v591, %v599
    %608 = vrot.lane.b32.xlu0 %v536, 88
    %v609 = vpop.permute.xlu0 %608
    %610 = vrot.lane.b32.xlu0 %v537, 88
    %v611 = vpop.permute.xlu0 %610
    %612 = vrot.lane.b32.xlu0 %v538, 88
    %v613 = vpop.permute.xlu0 %612
    %614 = vrot.lane.b32.xlu0 %v539, 88
    %v615 = vpop.permute.xlu0 %614
    %v620 = vadd.f32 %v604, %v609
    %v621 = vadd.f32 %v605, %v611
    %v622 = vadd.f32 %v606, %v613
    %v623 = vadd.f32 %v607, %v615
    %624 = vrot.lane.b32.xlu0 %v536, 80
    %v625 = vpop.permute.xlu0 %624
    %626 = vrot.lane.b32.xlu0 %v537, 80
    %v627 = vpop.permute.xlu0 %626
    %628 = vrot.lane.b32.xlu0 %v538, 80
    %v629 = vpop.permute.xlu0 %628
    %630 = vrot.lane.b32.xlu0 %v539, 80
    %v631 = vpop.permute.xlu0 %630
    %v636 = vadd.f32 %v620, %v625
    %v637 = vadd.f32 %v621, %v627
    %v638 = vadd.f32 %v622, %v629
    %v639 = vadd.f32 %v623, %v631
    %640 = vrot.lane.b32.xlu0 %v536, 72
    %v641 = vpop.permute.xlu0 %640
    %642 = vrot.lane.b32.xlu0 %v537, 72
    %v643 = vpop.permute.xlu0 %642
    %644 = vrot.lane.b32.xlu0 %v538, 72
    %v645 = vpop.permute.xlu0 %644
    %646 = vrot.lane.b32.xlu0 %v539, 72
    %v647 = vpop.permute.xlu0 %646
    %v652 = vadd.f32 %v636, %v641
    %v653 = vadd.f32 %v637, %v643
    %v654 = vadd.f32 %v638, %v645
    %v655 = vadd.f32 %v639, %v647
    %656 = vrot.lane.b32.xlu0 %v536, 64
    %v657 = vpop.permute.xlu0 %656
    %658 = vrot.lane.b32.xlu0 %v537, 64
    %v659 = vpop.permute.xlu0 %658
    %660 = vrot.lane.b32.xlu0 %v538, 64
    %v661 = vpop.permute.xlu0 %660
    %662 = vrot.lane.b32.xlu0 %v539, 64
    %v663 = vpop.permute.xlu0 %662
    %v668 = vadd.f32 %v652, %v657
    %v669 = vadd.f32 %v653, %v659
    %v670 = vadd.f32 %v654, %v661
    %v671 = vadd.f32 %v655, %v663
    %672 = vrot.lane.b32.xlu0 %v536, 56
    %v673 = vpop.permute.xlu0 %672
    %674 = vrot.lane.b32.xlu0 %v537, 56
    %v675 = vpop.permute.xlu0 %674
    %676 = vrot.lane.b32.xlu0 %v538, 56
    %v677 = vpop.permute.xlu0 %676
    %678 = vrot.lane.b32.xlu0 %v539, 56
    %v679 = vpop.permute.xlu0 %678
    %v684 = vadd.f32 %v668, %v673
    %v685 = vadd.f32 %v669, %v675
    %v686 = vadd.f32 %v670, %v677
    %v687 = vadd.f32 %v671, %v679
    %688 = vrot.lane.b32.xlu0 %v536, 48
    %v689 = vpop.permute.xlu0 %688
    %690 = vrot.lane.b32.xlu0 %v537, 48
    %v691 = vpop.permute.xlu0 %690
    %692 = vrot.lane.b32.xlu0 %v538, 48
    %v693 = vpop.permute.xlu0 %692
    %694 = vrot.lane.b32.xlu0 %v539, 48
    %v695 = vpop.permute.xlu0 %694
    %v700 = vadd.f32 %v684, %v689
    %v701 = vadd.f32 %v685, %v691
    %v702 = vadd.f32 %v686, %v693
    %v703 = vadd.f32 %v687, %v695
    %704 = vrot.lane.b32.xlu0 %v536, 40
    %v705 = vpop.permute.xlu0 %704
    %706 = vrot.lane.b32.xlu0 %v537, 40
    %v707 = vpop.permute.xlu0 %706
    %708 = vrot.lane.b32.xlu0 %v538, 40
    %v709 = vpop.permute.xlu0 %708
    %710 = vrot.lane.b32.xlu0 %v539, 40
    %v711 = vpop.permute.xlu0 %710
    %v716 = vadd.f32 %v700, %v705
    %v717 = vadd.f32 %v701, %v707
    %v718 = vadd.f32 %v702, %v709
    %v719 = vadd.f32 %v703, %v711
    %720 = vrot.lane.b32.xlu0 %v536, 32
    %v721 = vpop.permute.xlu0 %720
    %722 = vrot.lane.b32.xlu0 %v537, 32
    %v723 = vpop.permute.xlu0 %722
    %724 = vrot.lane.b32.xlu0 %v538, 32
    %v725 = vpop.permute.xlu0 %724
    %726 = vrot.lane.b32.xlu0 %v539, 32
    %v727 = vpop.permute.xlu0 %726
    %v732 = vadd.f32 %v716, %v721
    %v733 = vadd.f32 %v717, %v723
    %v734 = vadd.f32 %v718, %v725
    %v735 = vadd.f32 %v719, %v727
    %736 = vrot.lane.b32.xlu0 %v536, 24
    %v737 = vpop.permute.xlu0 %736
    %738 = vrot.lane.b32.xlu0 %v537, 24
    %v739 = vpop.permute.xlu0 %738
    %740 = vrot.lane.b32.xlu0 %v538, 24
    %v741 = vpop.permute.xlu0 %740
    %742 = vrot.lane.b32.xlu0 %v539, 24
    %v743 = vpop.permute.xlu0 %742
    %v748 = vadd.f32 %v732, %v737
    %v749 = vadd.f32 %v733, %v739
    %v750 = vadd.f32 %v734, %v741
    %v751 = vadd.f32 %v735, %v743
    %752 = vrot.lane.b32.xlu0 %v536, 16
    %v753 = vpop.permute.xlu0 %752
    %754 = vrot.lane.b32.xlu0 %v537, 16
    %v755 = vpop.permute.xlu0 %754
    %756 = vrot.lane.b32.xlu0 %v538, 16
    %v757 = vpop.permute.xlu0 %756
    %758 = vrot.lane.b32.xlu0 %v539, 16
    %v759 = vpop.permute.xlu0 %758
    %v764 = vadd.f32 %v748, %v753
    %v765 = vadd.f32 %v749, %v755
    %v766 = vadd.f32 %v750, %v757
    %v767 = vadd.f32 %v751, %v759
    %768 = vrot.lane.b32.xlu0 %v536, 8
    %v769 = vpop.permute.xlu0 %768
    %770 = vrot.lane.b32.xlu0 %v537, 8
    %v771 = vpop.permute.xlu0 %770
    %772 = vrot.lane.b32.xlu0 %v538, 8
    %v773 = vpop.permute.xlu0 %772
    %774 = vrot.lane.b32.xlu0 %v539, 8
    %v775 = vpop.permute.xlu0 %774
    %v780 = vadd.f32 %v764, %v769
    %v781 = vadd.f32 %v765, %v771
    %v782 = vadd.f32 %v766, %v773
    %v783 = vadd.f32 %v767, %v775
    %784 = vset.pattern.permute.xlu0 4
    %785 = vperm.xlu0 %784, %v26
    %v786 = vpop.permute.xlu0 %785
    %788 = vset.pattern.permute.xlu0 4
    %789 = vperm.xlu0 %788, %v27
    %v790 = vpop.permute.xlu0 %789
    %792 = vset.pattern.permute.xlu0 4
    %793 = vperm.xlu0 %792, %v28
    %v794 = vpop.permute.xlu0 %793
    %796 = vset.pattern.permute.xlu0 4
    %797 = vperm.xlu0 %796, %v29
    %v798 = vpop.permute.xlu0 %797
    %v800 = vmul.f32 %v780, %v786
    %v801 = vmul.f32 %v781, %v790
    %v802 = vmul.f32 %v782, %v794
    %v803 = vmul.f32 %v783, %v798
    %v804 = vsel %vm121, %v800, 0.0
    %v805 = vsel %vm121, %v801, 0.0
    %v806 = vadd.f32 %v804, %v805
    %v807 = vsel %vm121, %v802, 0.0
    %v808 = vadd.f32 %v806, %v807
    %v809 = vsel %vm121, %v803, 0.0
    %v810 = vadd.f32 %v808, %v809
    %v811 = vrot.slane %v810, 4
    %v812 = vadd.f32 %v810, %v811
    %v813 = vrot.slane %v812, 2
    %v814 = vadd.f32 %v812, %v813
    %v815 = vrot.slane %v814, 1
    %v816 = vadd.f32 %v814, %v815
    %818 = vset.pattern.permute.xlu0 5
    %819 = vperm.xlu0 %818, %v30
    %v820 = vpop.permute.xlu0 %819
    %v822 = vadd.f32 %v816, %v820
    %vm823 = vcmask 57344
    %824 = vst.msk [vmem:[#allocation2] sm:$0x1] %vm823, %v822
    // Predicated region
    $region26: #{tpu_custom_call.1} parent=1 // pred_check
      _
    $region27: #{tpu_custom_call.1} parent=1 // pred_check_branch
      %826 = sbr.rel (0) target = $region29
    $region28: #{tpu_custom_call.1} parent=1 // pred_region
      %s828 = ssub.s32 16, 16
      %829 = vsyncadd [#allocation3], %s828
      %s831 = sshll.u32 [#allocation2], 4
      %s832 = int_to_ptr.vmem [resolvable:$true] %s831
      %834 = dma.vmem_to_hbm [thread:$0]  %s832, 16, %s6, [#allocation3]
    $region29: #{tpu_custom_call.1} parent=1 // pred_fallthru
      _
    // Predicated region
    $region30: #{tpu_custom_call.1} parent=1 // pred_check
      _
    $region31: #{tpu_custom_call.1} parent=1 // pred_check_branch
      %836 = sbr.rel (0) target = $region33
    $region32: #{tpu_custom_call.1} parent=1 // pred_region
      %837 = dma.done [#allocation3], 16
    $region33: #{tpu_custom_call.1} parent=1 // pred_fallthru
      _
    %838 = vsyncpa [#allocation3], 1

</llo_original>
